<compile_context>
chip_gen: v7x
topology: tpu7x:2x2x1
jax: 0.10.0
libtpu: 0.0.40
codegen_flags: <defaults>
</compile_context>

<pallas_src>
import jax
import jax.numpy as jnp
from jax.experimental import pallas as pl
from jax.experimental.pallas import tpu as pltpu


def _make_kernel(num_hidden, row_block, c, f_in, apply_softmax, first_layer_vpu):
    """Fused MLP chain -> grouped VPU reduce -> (optional) temperature softmax."""

    def kernel(*refs):
        x_ref = refs[0]
        hidden_w_refs = refs[1:1 + num_hidden]
        w_last_ref = refs[1 + num_hidden]          # (1, hidden) f32, 1/T folded in
        out_ref = refs[2 + num_hidden]

        rows = row_block * c
        # (row_block, c, f_in) f32 -> (row_block*c, f_in): last dim unchanged and
        # c is a whole sublane tile (when c % 8 == 0), so this flatten is
        # layout-free.  bf16 cast (if any) happens below, in-kernel.
        x = x_ref[...].reshape(rows, f_in)

        if num_hidden == 0:
            acc = x                                  # f32
        else:
            if first_layer_vpu:
                # First Linear off the MXU: f_in broadcast-FMAs on the VPU
                # (contraction dim f_in would be ~97% zero-padding on the MXU).
                w0 = hidden_w_refs[0][...]           # (f_in, h0) f32
                acc = x[:, 0:1] * w0[0:1, :]
                for k in range(1, f_in):
                    acc = acc + x[:, k:k + 1] * w0[k:k + 1, :]
                acc = jnp.maximum(acc, 0.0)          # ReLU
                rest = hidden_w_refs[1:]
            else:
                acc = jnp.maximum(
                    jnp.dot(x.astype(jnp.bfloat16), hidden_w_refs[0][...],
                            preferred_element_type=jnp.float32), 0.0)
                rest = hidden_w_refs[1:]

            # Remaining hidden Linears: bf16 operands, f32 MXU accumulation.
            for w_ref in rest:
                acc = jnp.maximum(
                    jnp.dot(acc.astype(jnp.bfloat16), w_ref[...],
                            preferred_element_type=jnp.float32), 0.0)

        # Final Linear(hidden -> 1) as grouped VPU multiply + lane reduce:
        # (row_block, c, hidden) * (1, hidden) summed over hidden -> (row_block, c).
        # No (rows, 1) -> (row_block, c) relayout; 1/temperature already folded
        # into w_last in the wrapper.
        hid = acc.shape[-1]
        logits = jnp.sum(acc.reshape(row_block, c, hid) * w_last_ref[...], axis=-1)

        if apply_softmax:
            m = jnp.max(logits, axis=1, keepdims=True)
            e = jnp.exp(logits - m)
            denom = jnp.sum(e, axis=1, keepdims=True)
            out_ref[...] = (e * pl.reciprocal(denom, approx=True)).astype(out_ref.dtype)
        else:
            # Eval path: raw logits (argmax outside is invariant to softmax).
            out_ref[...] = logits.astype(out_ref.dtype)

    return kernel


def _round_row_block(tb, n):
    """Output block's second-minor dim must be a multiple of 8 or the full extent."""
    if tb >= n:
        return n
    return max(8, (tb // 8) * 8)


def _pick_row_block(n, c, f_in, max_hidden, budget_bytes):
    """Biggest batch-row tile fitting a conservative f32 VMEM budget, capped so
    the grid keeps >=4 steps once N is large (v7x shards 'parallel' axes across
    its two TensorCores)."""
    # Per batch row (c candidate rows): double-buffered f32 input block + f32
    # output block + a few live f32/bf16 activation tensors of the widest layer.
    per_row = c * 4 * (2 * f_in + 2 + 4 * max(max_hidden, f_in))
    tb = max(1, budget_bytes // max(per_row, 1))
    tb = min(tb, max(64, -(-n // 4)))          # >=4 grid steps once n > 256
    return _round_row_block(min(tb, n), n)


def arch_attention_forward(x, weights, *, temperature=0.07, training=True,
                           grad=False, row_block=None):
    """JAX/Pallas forward of the arch-attention head consumed by AutoLink_Seal.

    x:       (N, C, F_in) float32 — N edge pairs, C candidate cross_pair slots.
    weights: list of transposed Linear weights, w_i shape (in_i, out_i); last
             one has out == 1. (PyTorch stores (out, in); pass W.T.)
    Returns (N, C): softmax attention (training/grad) or one-hot argmax (eval).
    """
    n, c, f_in = x.shape
    num_hidden = len(weights) - 1
    max_hidden = max([int(w.shape[1]) for w in weights[:-1]] + [int(f_in)])

    # Chip-aware scoped-VMEM budget: half of physical VMEM (≈64 MiB on 128-MiB
    # v5e/v6e, 32 MiB on 64-MiB v7x), capped at 96 MiB.
    try:
        phys_vmem = int(pltpu.get_tpu_info().vmem_capacity_bytes)
    except Exception:
        phys_vmem = 128 * 1024 * 1024
    vmem_limit = int(min(phys_vmem // 2, 96 * 1024 * 1024))

    if row_block is None:
        row_block = _pick_row_block(n, c, f_in, max_hidden, vmem_limit // 2)
    row_block = _round_row_block(min(int(row_block), n), n)

    n_blocks = pl.cdiv(n, row_block)
    n_pad = n_blocks * row_block

    # x stays f32 and 3-D; the bf16 cast happens inside the kernel.  A zero
    # tail-pad (one HBM pass) is only needed when row_block does not divide N;
    # padded rows give a harmless uniform softmax row and are sliced off below.
    x_in = x.astype(jnp.float32)
    if n_pad != n:
        x_in = jnp.pad(x_in, ((0, n_pad - n), (0, 0), (0, 0)))

    apply_softmax = bool(training or grad)
    first_layer_vpu = (num_hidden >= 1) and (f_in <= 8)

    # Hidden-layer weights: bf16 for the MXU (first stays f32 if done on the
    # VPU).  1/temperature folded into the final (hidden -> 1) weight once here.
    w_hidden = []
    for li, w in enumerate(weights[:-1]):
        if li == 0 and first_layer_vpu:
            w_hidden.append(w.astype(jnp.float32))
        else:
            w_hidden.append(w.astype(jnp.bfloat16))
    w_last_row = weights[-1].reshape(1, -1).astype(jnp.float32) / jnp.float32(temperature)

    kernel = _make_kernel(num_hidden, row_block, c, f_in, apply_softmax,
                          first_layer_vpu)

    # Input blocked over batch rows (complete candidate groups); weights resident.
    in_specs = [pl.BlockSpec((row_block, c, f_in), lambda i: (i, 0, 0))]
    for w in w_hidden:
        in_specs.append(pl.BlockSpec(w.shape, lambda i: (0, 0)))
    in_specs.append(pl.BlockSpec(w_last_row.shape, lambda i: (0, 0)))

    flops = 2 * n_pad * c * sum(int(w.shape[0]) * int(w.shape[1]) for w in weights)
    bytes_accessed = (int(x_in.size) * 4
                      + sum(int(w.size) * w.dtype.itemsize for w in w_hidden)
                      + int(w_last_row.size) * 4
                      + n_pad * c * 4)
    transcendentals = (n_pad * c + n_pad) if apply_softmax else 0
    cost = pl.CostEstimate(flops=int(flops),
                           transcendentals=int(transcendentals),
                           bytes_accessed=int(bytes_accessed))

    out = pl.pallas_call(
        kernel,
        out_shape=jax.ShapeDtypeStruct((n_pad, c), jnp.float32),
        grid=(n_blocks,),
        in_specs=in_specs,
        # NOTE: last dim C is narrower than a lane group; a lane-dense
        # (C, row_block) slab (per review) only pays off at large N and would
        # add an in-kernel transpose, so the natural layout is kept here.
        out_specs=pl.BlockSpec((row_block, c), lambda i: (i, 0)),
        compiler_params=pltpu.CompilerParams(
            dimension_semantics=("parallel",),
            vmem_limit_bytes=vmem_limit),
        cost_estimate=cost,
    )(x_in, *w_hidden, w_last_row)

    out = out[:n]
    if apply_softmax:
        return out
    # eval, grad=False: one-hot of argmax over the candidate axis (glue path);
    # kernel already skipped the softmax, so this argmaxes raw logits.
    idx = jnp.argmax(out, axis=1)
    return jax.nn.one_hot(idx, c, dtype=jnp.float32)


def init_params(key, in_channels, hidden_channels, num_layers, cat_type="multi"):
    """Deterministic params matching _init_predictor's layer shapes.

    Returns a list of (in, out)-shaped matrices (transposed PyTorch weights).
    """
    if cat_type != "multi":
        in_channels = in_channels * 2
    dims = []
    for i in range(num_layers - 1):
        d_in = in_channels if i == 0 else hidden_channels
        dims.append((d_in, hidden_channels))
    dims.append((hidden_channels, 1))

    weights = []
    for (d_in, d_out) in dims:
        key, sub = jax.random.split(key)
        bound = 1.0 / jnp.sqrt(jnp.float32(d_in))
        w = jax.random.uniform(sub, (d_in, d_out), jnp.float32,
                               minval=-bound, maxval=bound)
        weights.append(w)
    return weights


if __name__ == "__main__":
    # Small shapes consistent with the module: N=16 edge pairs, C=8 candidate
    # cross_pair slots, in_channels=4, hidden_channels=32, lin_layers=3.
    N, C = 16, 8
    in_channels, hidden_channels, lin_layers = 4, 32, 3
    temperature = 0.07

    key = jax.random.PRNGKey(0)
    kx, kw = jax.random.split(key)
    x = jax.random.normal(kx, (N, C, in_channels), jnp.float32)
    weights = init_params(kw, in_channels, hidden_channels, lin_layers)

    # row_block=8 -> grid=(2,) so the pipelined/parallel grid path is exercised.
    out = jax.block_until_ready(
        arch_attention_forward(x, weights, temperature=temperature,
                               training=True, row_block=8))

    # Pure-JAX reference mirroring the kernel's dtype flow (first layer f32 on
    # VPU, remaining layers bf16 operands / f32 MXU accumulation, f32 final
    # reduce with 1/T folded into the last weight, softmax).
    x2 = x.reshape(N * C, in_channels)
    acc = jnp.maximum(x2 @ weights[0], 0.0)
    for w in weights[1:-1]:
        acc = jnp.maximum(
            jnp.dot(acc.astype(jnp.bfloat16), w.astype(jnp.bfloat16),
                    preferred_element_type=jnp.float32), 0.0)
    logits = jnp.sum(acc * (weights[-1].reshape(1, -1) / temperature), axis=-1)
    ref = jax.nn.softmax(logits.reshape(N, C), axis=1)

    assert out.shape == (N, C)
    assert jnp.allclose(out, ref, atol=5e-3, rtol=5e-3), (
        float(jnp.max(jnp.abs(out - ref))))

    # Also exercise the auto row-block path and the eval (argmax one-hot) path.
    out_auto = jax.block_until_ready(
        arch_attention_forward(x, weights, temperature=temperature, training=True))
    assert jnp.allclose(out_auto, ref, atol=5e-3, rtol=5e-3)

    out_eval = jax.block_until_ready(
        arch_attention_forward(x, weights, temperature=temperature,
                               training=False, grad=False))
    assert out_eval.shape == (N, C)
    assert jnp.allclose(out_eval.sum(axis=1), 1.0)           # one-hot rows
    assert jnp.allclose(out_eval.max(axis=1), 1.0)

    print("KERNEL_OK")
</pallas_src>

<mosaic_0001>
module attributes {stable_mosaic.version = 11 : i64} {
  func.func @kernel(%arg0: i32, %arg1: memref<8x8x4xf32, #tpu.memory_space<vmem>>, %arg2: memref<4x32xf32, #tpu.memory_space<vmem>>, %arg3: memref<32x32xbf16, #tpu.memory_space<vmem>>, %arg4: memref<1x32xf32, #tpu.memory_space<vmem>>, %arg5: memref<8x8xf32, #tpu.memory_space<vmem>>) attributes {dimension_semantics = [#tpu.dimension_semantics<parallel>], iteration_bounds = array<i64: 2>, scalar_prefetch = 0 : i64, scratch_operands = 0 : i64, tpu.core_type = #tpu.core_type<tc>, window_params = [{transform_indices = @transform_0, window_bounds = array<i64: 8, 8, 4>}, {pipeline_mode = #tpu.pipeline_mode<synchronous>, transform_indices = @transform_1, window_bounds = array<i64: 4, 32>}, {pipeline_mode = #tpu.pipeline_mode<synchronous>, transform_indices = @transform_2, window_bounds = array<i64: 32, 32>}, {pipeline_mode = #tpu.pipeline_mode<synchronous>, transform_indices = @transform_3, window_bounds = array<i64: 1, 32>}, {transform_indices = @transform_4, window_bounds = array<i64: 8, 8>}]} {
    %c0 = arith.constant 0 : index
    %c0_0 = arith.constant 0 : index
    %c0_1 = arith.constant 0 : index
    %0 = vector.load %arg1[%c0, %c0_0, %c0_1] : memref<8x8x4xf32, #tpu.memory_space<vmem>>, vector<8x8x4xf32>
    %1 = vector.shape_cast %0 : vector<8x8x4xf32> to vector<64x4xf32>
    %c0_2 = arith.constant 0 : index
    %c0_3 = arith.constant 0 : index
    %2 = vector.load %arg2[%c0_2, %c0_3] : memref<4x32xf32, #tpu.memory_space<vmem>>, vector<4x32xf32>
    %3 = vector.extract_strided_slice %1 {offsets = [0, 0], sizes = [64, 1], strides = [1, 1]} : vector<64x4xf32> to vector<64x1xf32>
    %4 = vector.extract_strided_slice %2 {offsets = [0, 0], sizes = [1, 32], strides = [1, 1]} : vector<4x32xf32> to vector<1x32xf32>
    %5 = vector.broadcast %3 : vector<64x1xf32> to vector<64x32xf32>
    %6 = vector.broadcast %4 : vector<1x32xf32> to vector<64x32xf32>
    %7 = arith.mulf %5, %6 : vector<64x32xf32>
    %8 = vector.extract_strided_slice %1 {offsets = [0, 1], sizes = [64, 1], strides = [1, 1]} : vector<64x4xf32> to vector<64x1xf32>
    %9 = vector.extract_strided_slice %2 {offsets = [1, 0], sizes = [1, 32], strides = [1, 1]} : vector<4x32xf32> to vector<1x32xf32>
    %10 = vector.broadcast %8 : vector<64x1xf32> to vector<64x32xf32>
    %11 = vector.broadcast %9 : vector<1x32xf32> to vector<64x32xf32>
    %12 = arith.mulf %10, %11 : vector<64x32xf32>
    %13 = arith.addf %7, %12 : vector<64x32xf32>
    %14 = vector.extract_strided_slice %1 {offsets = [0, 2], sizes = [64, 1], strides = [1, 1]} : vector<64x4xf32> to vector<64x1xf32>
    %15 = vector.extract_strided_slice %2 {offsets = [2, 0], sizes = [1, 32], strides = [1, 1]} : vector<4x32xf32> to vector<1x32xf32>
    %16 = vector.broadcast %14 : vector<64x1xf32> to vector<64x32xf32>
    %17 = vector.broadcast %15 : vector<1x32xf32> to vector<64x32xf32>
    %18 = arith.mulf %16, %17 : vector<64x32xf32>
    %19 = arith.addf %13, %18 : vector<64x32xf32>
    %20 = vector.extract_strided_slice %1 {offsets = [0, 3], sizes = [64, 1], strides = [1, 1]} : vector<64x4xf32> to vector<64x1xf32>
    %21 = vector.extract_strided_slice %2 {offsets = [3, 0], sizes = [1, 32], strides = [1, 1]} : vector<4x32xf32> to vector<1x32xf32>
    %22 = vector.broadcast %20 : vector<64x1xf32> to vector<64x32xf32>
    %23 = vector.broadcast %21 : vector<1x32xf32> to vector<64x32xf32>
    %24 = arith.mulf %22, %23 : vector<64x32xf32>
    %25 = arith.addf %19, %24 : vector<64x32xf32>
    %cst = arith.constant 0.000000e+00 : f32
    %26 = vector.broadcast %cst : f32 to vector<64x32xf32>
    %27 = arith.maximumf %25, %26 : vector<64x32xf32>
    %28 = arith.truncf %27 : vector<64x32xf32> to vector<64x32xbf16>
    %c0_4 = arith.constant 0 : index
    %c0_5 = arith.constant 0 : index
    %29 = vector.load %arg3[%c0_4, %c0_5] : memref<32x32xbf16, #tpu.memory_space<vmem>>, vector<32x32xbf16>
    %cst_6 = arith.constant dense<0.000000e+00> : vector<64x32xf32>
    %30 = tpu.matmul %28, %29, %cst_6 {dimension_numbers = #tpu.dot_dimension_numbers<[1], [0], [0], [1], [0, 0, 1, 1], [], []>} : vector<64x32xbf16>, vector<32x32xbf16>, vector<64x32xf32> -> vector<64x32xf32>
    %cst_7 = arith.constant 0.000000e+00 : f32
    %31 = vector.broadcast %cst_7 : f32 to vector<64x32xf32>
    %32 = arith.maximumf %30, %31 : vector<64x32xf32>
    %33 = vector.shape_cast %32 : vector<64x32xf32> to vector<8x8x32xf32>
    %c0_8 = arith.constant 0 : index
    %c0_9 = arith.constant 0 : index
    %34 = vector.load %arg4[%c0_8, %c0_9] : memref<1x32xf32, #tpu.memory_space<vmem>>, vector<1x32xf32>
    %35 = vector.shape_cast %34 : vector<1x32xf32> to vector<1x1x32xf32>
    %36 = vector.broadcast %35 : vector<1x1x32xf32> to vector<8x8x32xf32>
    %37 = arith.mulf %33, %36 : vector<8x8x32xf32>
    %cst_10 = arith.constant dense<0.000000e+00> : vector<8x8xf32>
    %38 = vector.multi_reduction <add>, %37, %cst_10 [2] : vector<8x8x32xf32> to vector<8x8xf32>
    %cst_11 = arith.constant dense<0xFF800000> : vector<8xf32>
    %39 = vector.multi_reduction <maximumf>, %38, %cst_11 [1] : vector<8x8xf32> to vector<8xf32>
    %40 = vector.shape_cast %39 : vector<8xf32> to vector<8x1xf32>
    %41 = vector.broadcast %40 : vector<8x1xf32> to vector<8x8xf32>
    %42 = arith.subf %38, %41 : vector<8x8xf32>
    %43 = math.exp %42 : vector<8x8xf32>
    %cst_12 = arith.constant dense<0.000000e+00> : vector<8xf32>
    %44 = vector.multi_reduction <add>, %43, %cst_12 [1] : vector<8x8xf32> to vector<8xf32>
    %45 = vector.shape_cast %44 : vector<8xf32> to vector<8x1xf32>
    %46 = tpu.reciprocal %45 {approx = true} : vector<8x1xf32> -> vector<8x1xf32>
    %47 = vector.broadcast %46 : vector<8x1xf32> to vector<8x8xf32>
    %48 = arith.mulf %43, %47 : vector<8x8xf32>
    %c0_13 = arith.constant 0 : index
    %c0_14 = arith.constant 0 : index
    %49 = vector.load %arg5[%c0_13, %c0_14] : memref<8x8xf32, #tpu.memory_space<vmem>>, vector<8x8xf32>
    tpu.vector_store %arg5[%c0_13, %c0_14], %48 {strides = array<i32>} : memref<8x8xf32, #tpu.memory_space<vmem>>, vector<8x8xf32>,
    return
  }
  func.func @transform_0(%arg0: i32) -> (i32, i32, i32) {
    %c0_i32 = arith.constant 0 : i32
    %c0_i32_0 = arith.constant 0 : i32
    %c0_i32_1 = arith.constant 0 : i32
    return %arg0, %c0_i32, %c0_i32_0 : i32, i32, i32
  }
  func.func @transform_1(%arg0: i32) -> (i32, i32) {
    %c0_i32 = arith.constant 0 : i32
    %c0_i32_0 = arith.constant 0 : i32
    %c0_i32_1 = arith.constant 0 : i32
    return %c0_i32, %c0_i32_0 : i32, i32
  }
  func.func @transform_2(%arg0: i32) -> (i32, i32) {
    %c0_i32 = arith.constant 0 : i32
    %c0_i32_0 = arith.constant 0 : i32
    %c0_i32_1 = arith.constant 0 : i32
    return %c0_i32, %c0_i32_0 : i32, i32
  }
  func.func @transform_3(%arg0: i32) -> (i32, i32) {
    %c0_i32 = arith.constant 0 : i32
    %c0_i32_0 = arith.constant 0 : i32
    %c0_i32_1 = arith.constant 0 : i32
    return %c0_i32, %c0_i32_0 : i32, i32
  }
  func.func @transform_4(%arg0: i32) -> (i32, i32) {
    %c0_i32 = arith.constant 0 : i32
    %c0_i32_0 = arith.constant 0 : i32
    return %arg0, %c0_i32 : i32, i32
  }
}

</mosaic_0001>

<llo_original>
// kernel: tpu_custom_call.1
$region0: #{tpu_custom_call.1}
  #allocation0 [shape = 'u32[]', space=smem, size = 0x4, offset = 0x4, fixed_abs, tag = 'smem constant byte address 0x4 - core index']
  #allocation1 [shape = 'u32[144,128]{1,0:T(1,128)}', space=vmem, size = 0x12000, scoped, tag = 'internal scratch']
  %s0 = inlined_call_operand.hbm [shape: f32[16,8,4], index: 0, kind: input, shape index: {}]
  %s1 = inlined_call_operand.hbm [shape: f32[4,32], index: 1, kind: input, shape index: {}]
  %s2 = inlined_call_operand.hbm [shape: bf16[32,32], index: 2, kind: input, shape index: {}]
  %s3 = inlined_call_operand.hbm [shape: f32[1,32], index: 3, kind: input, shape index: {}]
  %s4 = inlined_call_operand.hbm [shape: f32[16,8], index: 4, kind: output, shape index: {}]
  %s5 = sld [smem:[#allocation0]]
  $region65: #{tpu_custom_call.1} parent=0
    _
  %s7 = ssub.s32 1, %s5
  %s8 = scalar_select 0, %s7, %s5
  $region1: #{tpu_custom_call.1} parent=0
    #allocation2 [shape = 'u8[65536]{0}', space=vmem, size = 0x10000, scoped, tag = 'input window, operand 0']
    #allocation3 [shape = 's32[2]{0}', space=sflag, size = 0x8, scoped, tag = 'scoped memory for tpu_custom_call.1']
    #allocation4 [shape = 's32[2]{0}', space=sflag, size = 0x8, scoped, tag = 'scoped memory for tpu_custom_call.1']
    #allocation5 [shape = 'u8[2048]{0}', space=vmem, size = 0x800, scoped, tag = 'input window, operand 1, single buffered']
    #allocation6 [shape = 's32[1]{0}', space=sflag, size = 0x4, scoped, tag = 'scoped memory for tpu_custom_call.1']
    #allocation7 [shape = 'u8[8192]{0}', space=vmem, size = 0x2000, scoped, tag = 'input window, operand 2, single buffered']
    #allocation8 [shape = 'u8[512]{0}', space=vmem, size = 0x400, scoped, tag = 'input window, operand 3, single buffered']
    #allocation9 [shape = 's32[1]{0}', space=sflag, size = 0x4, scoped, tag = 'scoped memory for tpu_custom_call.1']
    #allocation10 [shape = 'u8[8192]{0}', space=vmem, size = 0x2000, scoped, tag = 'output window, operand 0']
    %9 = vsyncpa [#allocation3], 0
    %s10 = scalar_lea.sflag [#allocation3], 1
    %11 = vsyncpa %s10, 0
    %12 = vsyncpa [#allocation6], 0
    %13 = vsyncpa [#allocation9], 0
    %14 = vsyncpa [#allocation4], 0
    %s15 = scalar_lea.sflag [#allocation4], 1
    %16 = vsyncpa %s15, 0
    loop: start=0, step=1, limit=4
    $region2: #{tpu_custom_call.1} parent=1 // loop_pre_header
      _
    $region3: #{tpu_custom_call.1} parent=1 // loop_header
      %s18 = sphi 0, %s22
      %p19 = scmp.ge.s32.totalorder %s18, 4
      %s28 = sphi 0, %s30
      %s31 = sphi 0, %s28
      %s32 = sphi 0, %s31
      %s48 = sphi 0, %s32
      %s52 = sphi 0, %s52
      %s54 = sphi 0, %s52
      %s55 = sphi 0, %s54
      %s69 = sphi 0, %s55
      %s73 = sphi 0, %s73
      %s75 = sphi 0, %s73
      %s76 = sphi 0, %s75
      %s90 = sphi 0, %s76
      %s94 = sphi 0, %s94
      %s96 = sphi 0, %s94
      %s97 = sphi 0, %s96
      %s111 = sphi 0, %s97
      %s117 = sphi 0, %s119
      %s120 = sphi 0, %s117
      %s121 = sphi 0, %s120
      %s137 = sphi 0, %s121
    $region4: #{tpu_custom_call.1} parent=1 // loop_header_branch
      %21 = sbr.rel (%p19) target = $region8
    $region5: #{tpu_custom_call.1} parent=1 // loop_body
      %s23 = ssub.s32 %s18, 1
      %s24 = ssub.s32 %s18, 2
      %s25 = sadd.s32 %s18, 1
      %s26 = ssub.s32 %s18, %s25
      %p27 = scmp.eq.s32.totalorder %s26, 0
      %s29 = sadd.s32 %s28, 1
      %s30 = scalar_select %p27, %s28, %s29
      %p33 = pneg %p27
      %p34 = scmp.eq.s32.totalorder %s18, 1
      %p35 = por %p33, %p34
      %p36 = scmp.ne.s32.totalorder %s28, %s31
      %p37 = scmp.eq.s32.totalorder %s18, 0
      %p38 = por %p36, %p37
      %p39 = scmp.ne.s32.totalorder %s28, %s31
      %p40 = scmp.eq.s32.totalorder %s23, 1
      %p41 = por %p39, %p40
      %p42 = scmp.ne.s32.totalorder %s31, %s32
      %p43 = scmp.eq.s32.totalorder %s23, 0
      %p44 = por %p42, %p43
      %p45 = scmp.ne.s32.totalorder %s31, %s32
      %p46 = scmp.eq.s32.totalorder %s24, 1
      %p47 = por %p45, %p46
      %p49 = scmp.ne.s32.totalorder %s32, %s48
      %p50 = scmp.eq.s32.totalorder %s24, 0
      %p51 = por %p49, %p50
      %s53 = sadd.s32 %s52, 1
      %p56 = scmp.eq.s32.totalorder %s18, 1
      %p57 = scmp.ne.s32.totalorder %s52, %s54
      %p58 = scmp.eq.s32.totalorder %s18, 0
      %p59 = por %p57, %p58
      %p60 = scmp.ne.s32.totalorder %s52, %s54
      %p61 = scmp.eq.s32.totalorder %s23, 1
      %p62 = por %p60, %p61
      %p63 = scmp.ne.s32.totalorder %s54, %s55
      %p64 = scmp.eq.s32.totalorder %s23, 0
      %p65 = por %p63, %p64
      %p66 = scmp.ne.s32.totalorder %s54, %s55
      %p67 = scmp.eq.s32.totalorder %s24, 1
      %p68 = por %p66, %p67
      %p70 = scmp.ne.s32.totalorder %s55, %s69
      %p71 = scmp.eq.s32.totalorder %s24, 0
      %p72 = por %p70, %p71
      %s74 = sadd.s32 %s73, 1
      %p77 = scmp.eq.s32.totalorder %s18, 1
      %p78 = scmp.ne.s32.totalorder %s73, %s75
      %p79 = scmp.eq.s32.totalorder %s18, 0
      %p80 = por %p78, %p79
      %p81 = scmp.ne.s32.totalorder %s73, %s75
      %p82 = scmp.eq.s32.totalorder %s23, 1
      %p83 = por %p81, %p82
      %p84 = scmp.ne.s32.totalorder %s75, %s76
      %p85 = scmp.eq.s32.totalorder %s23, 0
      %p86 = por %p84, %p85
      %p87 = scmp.ne.s32.totalorder %s75, %s76
      %p88 = scmp.eq.s32.totalorder %s24, 1
      %p89 = por %p87, %p88
      %p91 = scmp.ne.s32.totalorder %s76, %s90
      %p92 = scmp.eq.s32.totalorder %s24, 0
      %p93 = por %p91, %p92
      %s95 = sadd.s32 %s94, 1
      %p98 = scmp.eq.s32.totalorder %s18, 1
      %p99 = scmp.ne.s32.totalorder %s94, %s96
      %p100 = scmp.eq.s32.totalorder %s18, 0
      %p101 = por %p99, %p100
      %p102 = scmp.ne.s32.totalorder %s94, %s96
      %p103 = scmp.eq.s32.totalorder %s23, 1
      %p104 = por %p102, %p103
      %p105 = scmp.ne.s32.totalorder %s96, %s97
      %p106 = scmp.eq.s32.totalorder %s23, 0
      %p107 = por %p105, %p106
      %p108 = scmp.ne.s32.totalorder %s96, %s97
      %p109 = scmp.eq.s32.totalorder %s24, 1
      %p110 = por %p108, %p109
      %p112 = scmp.ne.s32.totalorder %s97, %s111
      %p113 = scmp.eq.s32.totalorder %s24, 0
      %p114 = por %p112, %p113
      %s115 = ssub.s32 %s18, %s25
      %p116 = scmp.eq.s32.totalorder %s115, 0
      %s118 = sadd.s32 %s117, 1
      %s119 = scalar_select %p116, %s117, %s118
      %p122 = pneg %p116
      %p123 = scmp.eq.s32.totalorder %s18, 1
      %p124 = por %p122, %p123
      %p125 = scmp.ne.s32.totalorder %s117, %s120
      %p126 = scmp.eq.s32.totalorder %s18, 0
      %p127 = por %p125, %p126
      %p128 = scmp.ne.s32.totalorder %s117, %s120
      %p129 = scmp.eq.s32.totalorder %s23, 1
      %p130 = por %p128, %p129
      %p131 = scmp.ne.s32.totalorder %s120, %s121
      %p132 = scmp.eq.s32.totalorder %s23, 0
      %p133 = por %p131, %p132
      %p134 = scmp.ne.s32.totalorder %s120, %s121
      %p135 = scmp.eq.s32.totalorder %s24, 1
      %p136 = por %p134, %p135
      %p138 = scmp.ne.s32.totalorder %s121, %s137
      %p139 = scmp.eq.s32.totalorder %s24, 0
      %p140 = por %p138, %p139
      %p141 = scmp.le.s32.totalorder 1, %s18
      %p142 = scmp.lt.s32.totalorder %s18, 3
      %p143 = pnand %p141, %p142
      %p144 = pneg %p143
      // Predicated region
      $region9: #{tpu_custom_call.1} parent=5 // pred_check
        _
      $region10: #{tpu_custom_call.1} parent=5 // pred_check_branch
        %146 = sbr.rel (%p143) target = $region12
      $region11: #{tpu_custom_call.1} parent=5 // pred_region
        %s147 = ssub.s32 %s18, 1
        // Predicated region
        $region13: #{tpu_custom_call.1} parent=11 // pred_check
          %p148 = pneg %p65
        $region14: #{tpu_custom_call.1} parent=11 // pred_check_branch
          %150 = sbr.rel (%p148) target = $region16
        $region15: #{tpu_custom_call.1} parent=11 // pred_region
          %s152 = ssub.s32 64, 64
          %153 = vsyncadd [#allocation6], %s152
          %s155 = sshll.u32 [#allocation5], 4
          %s156 = int_to_ptr.vmem [resolvable:$true] %s155
          %158 = dma.hbm_to_vmem [thread:$0]  %s1, 64, %s156, [#allocation6]
        $region16: #{tpu_custom_call.1} parent=11 // pred_fallthru
          _
        // Predicated region
        $region17: #{tpu_custom_call.1} parent=11 // pred_check
          %p159 = pneg %p86
        $region18: #{tpu_custom_call.1} parent=11 // pred_check_branch
          %161 = sbr.rel (%p159) target = $region20
        $region19: #{tpu_custom_call.1} parent=11 // pred_region
          %s163 = ssub.s32 256, 256
          %164 = vsyncadd [#allocation6], %s163
          %s165 = sshll.u32 [#allocation7], 4
          %s166 = int_to_ptr.vmem [resolvable:$true] %s165
          %171 = dma.hbm_to_vmem [thread:$0]  %s2, 256, %s166, [#allocation6], 64, 64, 4
        $region20: #{tpu_custom_call.1} parent=11 // pred_fallthru
          _
        // Predicated region
        $region21: #{tpu_custom_call.1} parent=11 // pred_check
          %p172 = pneg %p107
        $region22: #{tpu_custom_call.1} parent=11 // pred_check_branch
          %174 = sbr.rel (%p172) target = $region24
        $region23: #{tpu_custom_call.1} parent=11 // pred_region
          %s176 = ssub.s32 16, 16
          %177 = vsyncadd [#allocation9], %s176
          %s179 = sshll.u32 [#allocation8], 4
          %s180 = int_to_ptr.vmem [resolvable:$true] %s179
          %182 = dma.hbm_to_vmem [thread:$0]  %s3, 16, %s180, [#allocation9]
        $region24: #{tpu_custom_call.1} parent=11 // pred_fallthru
          _
      $region12: #{tpu_custom_call.1} parent=5 // pred_fallthru
        _
      %p183 = scmp.lt.s32.totalorder %s18, 2
      // Predicated region
      $region25: #{tpu_custom_call.1} parent=5 // pred_check
        %p184 = pneg %p183
      $region26: #{tpu_custom_call.1} parent=5 // pred_check_branch
        %186 = sbr.rel (%p184) target = $region28
      $region27: #{tpu_custom_call.1} parent=5 // pred_region
        // Predicated region
        $region29: #{tpu_custom_call.1} parent=27 // pred_check
          %p187 = pneg %p38
        $region30: #{tpu_custom_call.1} parent=27 // pred_check_branch
          %189 = sbr.rel (%p187) target = $region32
        $region31: #{tpu_custom_call.1} parent=27 // pred_region
          %s190 = sand.u32 %s28, 1
          %s191 = scalar_lea.sflag [#allocation3], %s190
          %s192 = sand.u32 %s28, 1
          %s193 = smul.addr %s192, 64
          %s194 = scalar_lea.vmem [#allocation2], %s193
          %s195 = smul.u32 8, %s18
          %s197 = ssub.s32 1024, 1024
          %198 = vsyncadd %s191, %s197
          %s199 = smul.addr %s195, 128
          %s200 = scalar_lea.hbm %s0, %s199
          %s201 = sshll.u32 %s194, 4
          %s202 = int_to_ptr.vmem [resolvable:$true] %s201
          %207 = dma.hbm_to_vmem [thread:$0]  %s200, 1024, %s202, %s191, 128, 128, 8
        $region32: #{tpu_custom_call.1} parent=27 // pred_fallthru
          _
      $region28: #{tpu_custom_call.1} parent=5 // pred_fallthru
        _
      %p208 = scmp.le.s32.totalorder 1, %s18
      %p209 = scmp.lt.s32.totalorder %s18, 3
      %p210 = pnand %p208, %p209
      %p211 = pneg %p210
      // Predicated region
      $region33: #{tpu_custom_call.1} parent=5 // pred_check
        _
      $region34: #{tpu_custom_call.1} parent=5 // pred_check_branch
        %213 = sbr.rel (%p210) target = $region36
      $region35: #{tpu_custom_call.1} parent=5 // pred_region
        %s214 = ssub.s32 %s18, 1
        %s215 = sand.u32 %s31, 1
        %s216 = scalar_lea.sflag [#allocation3], %s215
        %s217 = sand.u32 %s31, 1
        %s218 = smul.addr %s217, 64
        %s219 = scalar_lea.vmem [#allocation2], %s218
        // Predicated region
        $region37: #{tpu_custom_call.1} parent=35 // pred_check
          %p220 = pneg %p44
        $region38: #{tpu_custom_call.1} parent=35 // pred_check_branch
          %222 = sbr.rel (%p220) target = $region40
        $region39: #{tpu_custom_call.1} parent=35 // pred_region
          %223 = dma.done %s216, 1024
        $region40: #{tpu_custom_call.1} parent=35 // pred_fallthru
          _
        // Predicated region
        $region41: #{tpu_custom_call.1} parent=35 // pred_check
          %p224 = pneg %p65
        $region42: #{tpu_custom_call.1} parent=35 // pred_check_branch
          %226 = sbr.rel (%p224) target = $region44
        $region43: #{tpu_custom_call.1} parent=35 // pred_region
          %227 = dma.done [#allocation6], 64
        $region44: #{tpu_custom_call.1} parent=35 // pred_fallthru
          _
        // Predicated region
        $region45: #{tpu_custom_call.1} parent=35 // pred_check
          %p228 = pneg %p86
        $region46: #{tpu_custom_call.1} parent=35 // pred_check_branch
          %230 = sbr.rel (%p228) target = $region48
        $region47: #{tpu_custom_call.1} parent=35 // pred_region
          %231 = dma.done [#allocation6], 256
        $region48: #{tpu_custom_call.1} parent=35 // pred_fallthru
          _
        // Predicated region
        $region49: #{tpu_custom_call.1} parent=35 // pred_check
          %p232 = pneg %p107
        $region50: #{tpu_custom_call.1} parent=35 // pred_check_branch
          %234 = sbr.rel (%p232) target = $region52
        $region51: #{tpu_custom_call.1} parent=35 // pred_region
          %235 = dma.done [#allocation9], 16
        $region52: #{tpu_custom_call.1} parent=35 // pred_fallthru
          _
        %s236 = sand.u32 %s31, 1
        %s237 = scalar_lea.sflag [#allocation3], %s236
        %s238 = sand.u32 %s31, 1
        %s239 = smul.addr %s238, 64
        %s240 = scalar_lea.vmem [#allocation2], %s239
        %p241 = pneg %p44
        %p242 = pneg %p41
        %p243 = pneg %p65
        %p244 = pneg %p62
        %p245 = pneg %p86
        %p246 = pneg %p83
        %p247 = pneg %p107
        %p248 = pneg %p104
        %p249 = pneg %p133
        %p250 = pneg %p130
        %s251 = sand.u32 %s120, 1
        %s252 = scalar_lea.sflag [#allocation4], %s251
        %s253 = sand.u32 %s120, 1
        %s254 = smul.addr %s253, 8
        %s255 = scalar_lea.vmem [#allocation10], %s254
        %s256 = smul.u32 8, %s23
        %v258 = vld [vmem:[%s219] sm:$0xff]
        %v259 = vld [vmem:[%s219 + $0x8] sm:$0xff]
        %v260 = vld [vmem:[%s219 + $0x10] sm:$0xff]
        %v261 = vld [vmem:[%s219 + $0x18] sm:$0xff]
        %v262 = vld [vmem:[%s219 + $0x20] sm:$0xff]
        %v263 = vld [vmem:[%s219 + $0x28] sm:$0xff]
        %v264 = vld [vmem:[%s219 + $0x30] sm:$0xff]
        %v265 = vld [vmem:[%s219 + $0x38] sm:$0xff]
        %v266 = vld [vmem:[#allocation5] sm:$0xf]
        %268 = vset.pattern.permute.xlu0 0
        %269 = vperm.xlu0 %268, %v258
        %v270 = vpop.permute.xlu0 %269
        %273 = vset.pattern.permute.xlu0 0
        %274 = vperm.xlu0 %273, %v259
        %v275 = vpop.permute.xlu0 %274
        %278 = vset.pattern.permute.xlu0 0
        %279 = vperm.xlu0 %278, %v260
        %v280 = vpop.permute.xlu0 %279
        %283 = vset.pattern.permute.xlu0 0
        %284 = vperm.xlu0 %283, %v261
        %v285 = vpop.permute.xlu0 %284
        %288 = vset.pattern.permute.xlu0 0
        %289 = vperm.xlu0 %288, %v262
        %v290 = vpop.permute.xlu0 %289
        %293 = vset.pattern.permute.xlu0 0
        %294 = vperm.xlu0 %293, %v263
        %v295 = vpop.permute.xlu0 %294
        %298 = vset.pattern.permute.xlu0 0
        %299 = vperm.xlu0 %298, %v264
        %v300 = vpop.permute.xlu0 %299
        %303 = vset.pattern.permute.xlu0 0
        %304 = vperm.xlu0 %303, %v265
        %v305 = vpop.permute.xlu0 %304
        %v307 = vlaneseq
        %v308 = vshrl.u32 %v307, 7
        %v309 = vsub.s32 0, %v308
        %v310 = vrot.slane %v266, %v309
        %v311 = vmul.f32 %v270, %v310
        %v312 = vmul.f32 %v275, %v310
        %v313 = vmul.f32 %v280, %v310
        %v314 = vmul.f32 %v285, %v310
        %v315 = vmul.f32 %v290, %v310
        %v316 = vmul.f32 %v295, %v310
        %v317 = vmul.f32 %v300, %v310
        %v318 = vmul.f32 %v305, %v310
        %319 = vset.pattern.permute.xlu0 1
        %320 = vperm.xlu0 %319, %v258
        %v321 = vpop.permute.xlu0 %320
        %323 = vset.pattern.permute.xlu0 1
        %324 = vperm.xlu0 %323, %v259
        %v325 = vpop.permute.xlu0 %324
        %327 = vset.pattern.permute.xlu0 1
        %328 = vperm.xlu0 %327, %v260
        %v329 = vpop.permute.xlu0 %328
        %331 = vset.pattern.permute.xlu0 1
        %332 = vperm.xlu0 %331, %v261
        %v333 = vpop.permute.xlu0 %332
        %335 = vset.pattern.permute.xlu0 1
        %336 = vperm.xlu0 %335, %v262
        %v337 = vpop.permute.xlu0 %336
        %339 = vset.pattern.permute.xlu0 1
        %340 = vperm.xlu0 %339, %v263
        %v341 = vpop.permute.xlu0 %340
        %343 = vset.pattern.permute.xlu0 1
        %344 = vperm.xlu0 %343, %v264
        %v345 = vpop.permute.xlu0 %344
        %347 = vset.pattern.permute.xlu0 1
        %348 = vperm.xlu0 %347, %v265
        %v349 = vpop.permute.xlu0 %348
        %v351 = vlaneseq
        %v352 = vshrl.u32 %v351, 7
        %v353 = vsub.s32 1, %v352
        %v354 = vrot.slane %v266, %v353
        %v355 = vmul.f32 %v321, %v354
        %v356 = vmul.f32 %v325, %v354
        %v357 = vmul.f32 %v329, %v354
        %v358 = vmul.f32 %v333, %v354
        %v359 = vmul.f32 %v337, %v354
        %v360 = vmul.f32 %v341, %v354
        %v361 = vmul.f32 %v345, %v354
        %v362 = vmul.f32 %v349, %v354
        %v363 = vadd.f32 %v311, %v355
        %v364 = vadd.f32 %v312, %v356
        %v365 = vadd.f32 %v313, %v357
        %v366 = vadd.f32 %v314, %v358
        %v367 = vadd.f32 %v315, %v359
        %v368 = vadd.f32 %v316, %v360
        %v369 = vadd.f32 %v317, %v361
        %v370 = vadd.f32 %v318, %v362
        %371 = vset.pattern.permute.xlu0 2
        %372 = vperm.xlu0 %371, %v258
        %v373 = vpop.permute.xlu0 %372
        %375 = vset.pattern.permute.xlu0 2
        %376 = vperm.xlu0 %375, %v259
        %v377 = vpop.permute.xlu0 %376
        %379 = vset.pattern.permute.xlu0 2
        %380 = vperm.xlu0 %379, %v260
        %v381 = vpop.permute.xlu0 %380
        %383 = vset.pattern.permute.xlu0 2
        %384 = vperm.xlu0 %383, %v261
        %v385 = vpop.permute.xlu0 %384
        %387 = vset.pattern.permute.xlu0 2
        %388 = vperm.xlu0 %387, %v262
        %v389 = vpop.permute.xlu0 %388
        %391 = vset.pattern.permute.xlu0 2
        %392 = vperm.xlu0 %391, %v263
        %v393 = vpop.permute.xlu0 %392
        %395 = vset.pattern.permute.xlu0 2
        %396 = vperm.xlu0 %395, %v264
        %v397 = vpop.permute.xlu0 %396
        %399 = vset.pattern.permute.xlu0 2
        %400 = vperm.xlu0 %399, %v265
        %v401 = vpop.permute.xlu0 %400
        %v403 = vlaneseq
        %v404 = vshrl.u32 %v403, 7
        %v405 = vsub.s32 2, %v404
        %v406 = vrot.slane %v266, %v405
        %v407 = vmul.f32 %v373, %v406
        %v408 = vmul.f32 %v377, %v406
        %v409 = vmul.f32 %v381, %v406
        %v410 = vmul.f32 %v385, %v406
        %v411 = vmul.f32 %v389, %v406
        %v412 = vmul.f32 %v393, %v406
        %v413 = vmul.f32 %v397, %v406
        %v414 = vmul.f32 %v401, %v406
        %v415 = vadd.f32 %v363, %v407
        %v416 = vadd.f32 %v364, %v408
        %v417 = vadd.f32 %v365, %v409
        %v418 = vadd.f32 %v366, %v410
        %v419 = vadd.f32 %v367, %v411
        %v420 = vadd.f32 %v368, %v412
        %v421 = vadd.f32 %v369, %v413
        %v422 = vadd.f32 %v370, %v414
        %423 = vset.pattern.permute.xlu0 3
        %424 = vperm.xlu0 %423, %v258
        %v425 = vpop.permute.xlu0 %424
        %427 = vset.pattern.permute.xlu0 3
        %428 = vperm.xlu0 %427, %v259
        %v429 = vpop.permute.xlu0 %428
        %431 = vset.pattern.permute.xlu0 3
        %432 = vperm.xlu0 %431, %v260
        %v433 = vpop.permute.xlu0 %432
        %435 = vset.pattern.permute.xlu0 3
        %436 = vperm.xlu0 %435, %v261
        %v437 = vpop.permute.xlu0 %436
        %439 = vset.pattern.permute.xlu0 3
        %440 = vperm.xlu0 %439, %v262
        %v441 = vpop.permute.xlu0 %440
        %443 = vset.pattern.permute.xlu0 3
        %444 = vperm.xlu0 %443, %v263
        %v445 = vpop.permute.xlu0 %444
        %447 = vset.pattern.permute.xlu0 3
        %448 = vperm.xlu0 %447, %v264
        %v449 = vpop.permute.xlu0 %448
        %451 = vset.pattern.permute.xlu0 3
        %452 = vperm.xlu0 %451, %v265
        %v453 = vpop.permute.xlu0 %452
        %v455 = vlaneseq
        %v456 = vshrl.u32 %v455, 7
        %v457 = vsub.s32 3, %v456
        %v458 = vrot.slane %v266, %v457
        %v459 = vmul.f32 %v425, %v458
        %v460 = vmul.f32 %v429, %v458
        %v461 = vmul.f32 %v433, %v458
        %v462 = vmul.f32 %v437, %v458
        %v463 = vmul.f32 %v441, %v458
        %v464 = vmul.f32 %v445, %v458
        %v465 = vmul.f32 %v449, %v458
        %v466 = vmul.f32 %v453, %v458
        %v467 = vadd.f32 %v415, %v459
        %v468 = vadd.f32 %v416, %v460
        %v469 = vadd.f32 %v417, %v461
        %v470 = vadd.f32 %v418, %v462
        %v471 = vadd.f32 %v419, %v463
        %v472 = vadd.f32 %v420, %v464
        %v473 = vadd.f32 %v421, %v465
        %v474 = vadd.f32 %v422, %v466
        %v475 = vmax.f32 %v467, 0.0
        %v476 = vmax.f32 %v468, 0.0
        %v477 = vmax.f32 %v469, 0.0
        %v478 = vmax.f32 %v470, 0.0
        %v479 = vmax.f32 %v471, 0.0
        %v480 = vmax.f32 %v472, 0.0
        %v481 = vmax.f32 %v473, 0.0
        %v482 = vmax.f32 %v474, 0.0
        %v483 = vpack.c.bf16 %v476, %v475
        %v484 = vpack.c.bf16 %v478, %v477
        %v485 = vpack.c.bf16 %v480, %v479
        %v486 = vpack.c.bf16 %v482, %v481
        %v487 = vld [vmem:[#allocation7] sm:$0xf]
        %v488 = vld [vmem:[#allocation7 + $0x4] sm:$0xf]
        %v489 = vld [vmem:[#allocation7 + $0x8] sm:$0xf]
        %v490 = vld [vmem:[#allocation7 + $0xc] sm:$0xf]
        %v495 = vunpack.c.l.b16 %v487
        %v496 = vunpack.c.l.b16 %v488
        %v497 = vunpack.c.l.b16 %v489
        %v498 = vunpack.c.l.b16 %v490
        %v499 = vpack.c.b16 %v496, %v495
        %v500 = vpack.c.b16 %v498, %v497
        %vm503 = vcmask 261120
        %v505 = vsel %vm503, %v483, 0
        %v508 = vsel %vm503, %v484, 0
        %v511 = vsel %vm503, %v485, 0
        %v514 = vsel %vm503, %v486, 0
        %516 = vmatprep.subr.bf16.mxu0 0
        %517 = vmatpush1.bf16.msra.mxu0 %v499
        %518 = vmatprep.subr.bf16.mxu0 0
        %519 = vmatpush1.bf16.msra.mxu0 %v500
        %520 = vmatprep.subr.bf16.mxu0 0
        %521 = vmatpush1.bf16.msra.mxu0 0
        %522 = vmatprep.subr.bf16.mxu0 0
        %523 = vmatpush1.bf16.msra.mxu0 0
        %524 = vmatprep.subr.bf16.mxu0 0
        %525 = vmatpush1.bf16.msra.mxu0 0
        %526 = vmatprep.subr.bf16.mxu0 0
        %527 = vmatpush1.bf16.msra.mxu0 0
        %528 = vmatprep.subr.bf16.mxu0 0
        %529 = vmatpush1.bf16.msra.mxu0 0
        %530 = vmatprep.subr.bf16.mxu0 0
        %531 = vmatpush1.bf16.msra.mxu0 0
        %532 = vmatprep.subr.bf16.mxu0 0
        %533 = vmatpush1.bf16.msra.mxu0 0
        %534 = vmatprep.subr.bf16.mxu0 0
        %535 = vmatpush1.bf16.msra.mxu0 0
        %536 = vmatprep.subr.bf16.mxu0 0
        %537 = vmatpush1.bf16.msra.mxu0 0
        %538 = vmatprep.subr.bf16.mxu0 0
        %539 = vmatpush1.bf16.msra.mxu0 0
        %540 = vmatprep.subr.bf16.mxu0 0
        %541 = vmatpush1.bf16.msra.mxu0 0
        %542 = vmatprep.subr.bf16.mxu0 0
        %543 = vmatpush1.bf16.msra.mxu0 0
        %544 = vmatprep.subr.bf16.mxu0 0
        %545 = vmatpush1.bf16.msra.mxu0 0
        %546 = vmatprep.subr.bf16.mxu0 0
        %547 = vmatpush1.bf16.msra.mxu0 0
        %548 = vmatprep.mubr.bf16.mxu0 0
        %549 = vmatmul.mubr.bf16.gmra.mrb[0].mxu0 %v505
        %v550 = vpop.f32.mrb[0].mxu0
        %v551 = vadd.f32 0.0, %v550
        %v552 = vpop.f32.mrb[0].mxu0
        %v553 = vpop.f32.mrb[0].mxu0
        %v554 = vadd.f32 0.0, %v553
        %v555 = vpop.f32.mrb[0].mxu0
        %556 = vmatprep.mubr.bf16.mxu0 0
        %557 = vmatmul.mubr.bf16.gmra.mrb[0].mxu0 %v508
        %v558 = vpop.f32.mrb[0].mxu0
        %v559 = vadd.f32 0.0, %v558
        %v560 = vpop.f32.mrb[0].mxu0
        %v561 = vpop.f32.mrb[0].mxu0
        %v562 = vadd.f32 0.0, %v561
        %v563 = vpop.f32.mrb[0].mxu0
        %564 = vmatprep.mubr.bf16.mxu0 0
        %565 = vmatmul.mubr.bf16.gmra.mrb[0].mxu0 %v511
        %v566 = vpop.f32.mrb[0].mxu0
        %v567 = vadd.f32 0.0, %v566
        %v568 = vpop.f32.mrb[0].mxu0
        %v569 = vpop.f32.mrb[0].mxu0
        %v570 = vadd.f32 0.0, %v569
        %v571 = vpop.f32.mrb[0].mxu0
        %572 = vmatprep.mubr.bf16.mxu0 0
        %573 = vmatmul.mubr.bf16.gmra.mrb[0].mxu0 %v514
        %v574 = vpop.f32.mrb[0].mxu0
        %v575 = vadd.f32 0.0, %v574
        %v576 = vpop.f32.mrb[0].mxu0
        %v577 = vpop.f32.mrb[0].mxu0
        %v578 = vadd.f32 0.0, %v577
        %v579 = vpop.f32.mrb[0].mxu0
        %580 = vdwg.mxu0
        %v581 = vmax.f32 %v551, 0.0
        %v582 = vmax.f32 %v554, 0.0
        %v583 = vmax.f32 %v559, 0.0
        %v584 = vmax.f32 %v562, 0.0
        %v585 = vmax.f32 %v567, 0.0
        %v586 = vmax.f32 %v570, 0.0
        %v587 = vmax.f32 %v575, 0.0
        %v588 = vmax.f32 %v578, 0.0
        %v589 = vld [vmem:[#allocation8] sm:$0x1]
        %v591 = vlaneseq
        %v592 = vshrl.u32 %v591, 7
        %v593 = vsub.s32 0, %v592
        %v594 = vrot.slane %v589, %v593
        %v596 = vmul.f32 %v581, %v594
        %v597 = vmul.f32 %v582, %v594
        %v598 = vmul.f32 %v583, %v594
        %v599 = vmul.f32 %v584, %v594
        %v600 = vmul.f32 %v585, %v594
        %v601 = vmul.f32 %v586, %v594
        %v602 = vmul.f32 %v587, %v594
        %v603 = vmul.f32 %v588, %v594
        %v604 = vsel %vm503, %v596, 0.0
        %605 = vadd.xlane.f32.xlu0 %v604
        %v606 = vpop.xlane.xlu0 %605
        %v607 = vsel %vm503, %v597, 0.0
        %608 = vadd.xlane.f32.xlu0 %v607
        %v609 = vpop.xlane.xlu0 %608
        %v610 = vsel %vm503, %v598, 0.0
        %611 = vadd.xlane.f32.xlu0 %v610
        %v612 = vpop.xlane.xlu0 %611
        %v613 = vsel %vm503, %v599, 0.0
        %614 = vadd.xlane.f32.xlu0 %v613
        %v615 = vpop.xlane.xlu0 %614
        %v616 = vsel %vm503, %v600, 0.0
        %617 = vadd.xlane.f32.xlu0 %v616
        %v618 = vpop.xlane.xlu0 %617
        %v619 = vsel %vm503, %v601, 0.0
        %620 = vadd.xlane.f32.xlu0 %v619
        %v621 = vpop.xlane.xlu0 %620
        %v622 = vsel %vm503, %v602, 0.0
        %623 = vadd.xlane.f32.xlu0 %v622
        %v624 = vpop.xlane.xlu0 %623
        %v625 = vsel %vm503, %v603, 0.0
        %626 = vadd.xlane.f32.xlu0 %v625
        %v627 = vpop.xlane.xlu0 %626
        %v636 = vlaneseq
        %v637 = vand.u32 %v636, 127
        %v638 = vlaneseq
        %v639 = vshrl.u32 %v638, 7
        %v640 = vsub.s32 %v637, %v639
        %v641 = vrot.slane %v606, %v640
        %v642 = vlaneseq
        %v643 = vshrl.u32 %v642, 7
        %v644 = vsub.s32 %v637, %v643
        %v645 = vrot.slane %v609, %v644
        %v646 = vlaneseq
        %v647 = vshrl.u32 %v646, 7
        %v648 = vsub.s32 %v637, %v647
        %v649 = vrot.slane %v612, %v648
        %v650 = vlaneseq
        %v651 = vshrl.u32 %v650, 7
        %v652 = vsub.s32 %v637, %v651
        %v653 = vrot.slane %v615, %v652
        %v654 = vlaneseq
        %v655 = vshrl.u32 %v654, 7
        %v656 = vsub.s32 %v637, %v655
        %v657 = vrot.slane %v618, %v656
        %v658 = vlaneseq
        %v659 = vshrl.u32 %v658, 7
        %v660 = vsub.s32 %v637, %v659
        %v661 = vrot.slane %v621, %v660
        %v662 = vlaneseq
        %v663 = vshrl.u32 %v662, 7
        %v664 = vsub.s32 %v637, %v663
        %v665 = vrot.slane %v624, %v664
        %v666 = vlaneseq
        %v667 = vshrl.u32 %v666, 7
        %v668 = vsub.s32 %v637, %v667
        %v669 = vrot.slane %v627, %v668
        %vm670 = vcmask 1041409
        %v671 = vsel %vm670, %v645, %v641
        %vm672 = vcmask 1042434
        %v673 = vsel %vm672, %v649, %v671
        %vm674 = vcmask 1043459
        %v675 = vsel %vm674, %v653, %v673
        %vm676 = vcmask 1044484
        %v677 = vsel %vm676, %v657, %v675
        %vm678 = vcmask 1045509
        %v679 = vsel %vm678, %v661, %v677
        %vm680 = vcmask 1046534
        %v681 = vsel %vm680, %v665, %v679
        %vm682 = vcmask 1047559
        %v683 = vsel %vm682, %v669, %v681
        %vm685 = vcmask 64512
        %v686 = vsel %vm685, %v683, -inf
        %687 = vmax.xlane.f32.xlu0 %v686
        %v688 = vpop.xlane.xlu0 %687
        %v690 = vlaneseq
        %v691 = vshrl.u32 %v690, 7
        %v692 = vsub.s32 0, %v691
        %v693 = vrot.slane %v688, %v692
        %v694 = vlaneseq
        %v695 = vshrl.u32 %v694, 7
        %v696 = vsub.s32 1, %v695
        %v697 = vrot.slane %v688, %v696
        %v698 = vlaneseq
        %v699 = vshrl.u32 %v698, 7
        %v700 = vsub.s32 2, %v699
        %v701 = vrot.slane %v688, %v700
        %v702 = vlaneseq
        %v703 = vshrl.u32 %v702, 7
        %v704 = vsub.s32 3, %v703
        %v705 = vrot.slane %v688, %v704
        %v706 = vlaneseq
        %v707 = vshrl.u32 %v706, 7
        %v708 = vsub.s32 4, %v707
        %v709 = vrot.slane %v688, %v708
        %v710 = vlaneseq
        %v711 = vshrl.u32 %v710, 7
        %v712 = vsub.s32 5, %v711
        %v713 = vrot.slane %v688, %v712
        %v714 = vlaneseq
        %v715 = vshrl.u32 %v714, 7
        %v716 = vsub.s32 6, %v715
        %v717 = vrot.slane %v688, %v716
        %v718 = vlaneseq
        %v719 = vshrl.u32 %v718, 7
        %v720 = vsub.s32 7, %v719
        %v721 = vrot.slane %v688, %v720
        %v730 = vsub.f32 %v606, %v693
        %v731 = vsub.f32 %v609, %v697
        %v732 = vsub.f32 %v612, %v701
        %v733 = vsub.f32 %v615, %v705
        %v734 = vsub.f32 %v618, %v709
        %v735 = vsub.f32 %v621, %v713
        %v736 = vsub.f32 %v624, %v717
        %v737 = vsub.f32 %v627, %v721
        %v738 = vmul.f32 %v730, 1.442695
        %v739 = vpow.pop %v738
        %v740 = vmul.f32 %v731, 1.442695
        %v741 = vpow.pop %v740
        %v742 = vmul.f32 %v732, 1.442695
        %v743 = vpow.pop %v742
        %v744 = vmul.f32 %v733, 1.442695
        %v745 = vpow.pop %v744
        %v746 = vmul.f32 %v734, 1.442695
        %v747 = vpow.pop %v746
        %v748 = vmul.f32 %v735, 1.442695
        %v749 = vpow.pop %v748
        %v750 = vmul.f32 %v736, 1.442695
        %v751 = vpow.pop %v750
        %v752 = vmul.f32 %v737, 1.442695
        %v753 = vpow.pop %v752
        %762 = vset.pattern.permute.xlu0 0
        %763 = vperm.xlu0 %762, %v739
        %v764 = vpop.permute.xlu0 %763
        %765 = vset.pattern.permute.xlu0 0
        %766 = vperm.xlu0 %765, %v741
        %v767 = vpop.permute.xlu0 %766
        %768 = vset.pattern.permute.xlu0 0
        %769 = vperm.xlu0 %768, %v743
        %v770 = vpop.permute.xlu0 %769
        %771 = vset.pattern.permute.xlu0 0
        %772 = vperm.xlu0 %771, %v745
        %v773 = vpop.permute.xlu0 %772
        %774 = vset.pattern.permute.xlu0 0
        %775 = vperm.xlu0 %774, %v747
        %v776 = vpop.permute.xlu0 %775
        %777 = vset.pattern.permute.xlu0 0
        %778 = vperm.xlu0 %777, %v749
        %v779 = vpop.permute.xlu0 %778
        %780 = vset.pattern.permute.xlu0 0
        %781 = vperm.xlu0 %780, %v751
        %v782 = vpop.permute.xlu0 %781
        %783 = vset.pattern.permute.xlu0 0
        %784 = vperm.xlu0 %783, %v753
        %v785 = vpop.permute.xlu0 %784
        %v786 = vlaneseq
        %v787 = vshrl.u32 %v786, 7
        %v788 = vsub.s32 %v637, %v787
        %v789 = vrot.slane %v764, %v788
        %v790 = vlaneseq
        %v791 = vshrl.u32 %v790, 7
        %v792 = vsub.s32 %v637, %v791
        %v793 = vrot.slane %v767, %v792
        %v794 = vlaneseq
        %v795 = vshrl.u32 %v794, 7
        %v796 = vsub.s32 %v637, %v795
        %v797 = vrot.slane %v770, %v796
        %v798 = vlaneseq
        %v799 = vshrl.u32 %v798, 7
        %v800 = vsub.s32 %v637, %v799
        %v801 = vrot.slane %v773, %v800
        %v802 = vlaneseq
        %v803 = vshrl.u32 %v802, 7
        %v804 = vsub.s32 %v637, %v803
        %v805 = vrot.slane %v776, %v804
        %v806 = vlaneseq
        %v807 = vshrl.u32 %v806, 7
        %v808 = vsub.s32 %v637, %v807
        %v809 = vrot.slane %v779, %v808
        %v810 = vlaneseq
        %v811 = vshrl.u32 %v810, 7
        %v812 = vsub.s32 %v637, %v811
        %v813 = vrot.slane %v782, %v812
        %v814 = vlaneseq
        %v815 = vshrl.u32 %v814, 7
        %v816 = vsub.s32 %v637, %v815
        %v817 = vrot.slane %v785, %v816
        %v818 = vsel %vm670, %v793, %v789
        %v819 = vsel %vm672, %v797, %v818
        %v820 = vsel %vm674, %v801, %v819
        %v821 = vsel %vm676, %v805, %v820
        %v822 = vsel %vm678, %v809, %v821
        %v823 = vsel %vm680, %v813, %v822
        %v824 = vsel %vm682, %v817, %v823
        %v826 = vsel %vm685, %v824, 0.0
        %827 = vadd.xlane.f32.xlu0 %v826
        %v828 = vpop.xlane.xlu0 %827
        %v829 = vrcp.pop %v828
        %v831 = vlaneseq
        %v832 = vshrl.u32 %v831, 7
        %v833 = vsub.s32 0, %v832
        %v834 = vrot.slane %v829, %v833
        %v835 = vlaneseq
        %v836 = vshrl.u32 %v835, 7
        %v837 = vsub.s32 1, %v836
        %v838 = vrot.slane %v829, %v837
        %v839 = vlaneseq
        %v840 = vshrl.u32 %v839, 7
        %v841 = vsub.s32 2, %v840
        %v842 = vrot.slane %v829, %v841
        %v843 = vlaneseq
        %v844 = vshrl.u32 %v843, 7
        %v845 = vsub.s32 3, %v844
        %v846 = vrot.slane %v829, %v845
        %v847 = vlaneseq
        %v848 = vshrl.u32 %v847, 7
        %v849 = vsub.s32 4, %v848
        %v850 = vrot.slane %v829, %v849
        %v851 = vlaneseq
        %v852 = vshrl.u32 %v851, 7
        %v853 = vsub.s32 5, %v852
        %v854 = vrot.slane %v829, %v853
        %v855 = vlaneseq
        %v856 = vshrl.u32 %v855, 7
        %v857 = vsub.s32 6, %v856
        %v858 = vrot.slane %v829, %v857
        %v859 = vlaneseq
        %v860 = vshrl.u32 %v859, 7
        %v861 = vsub.s32 7, %v860
        %v862 = vrot.slane %v829, %v861
        %v871 = vmul.f32 %v739, %v834
        %v872 = vmul.f32 %v741, %v838
        %v873 = vmul.f32 %v743, %v842
        %v874 = vmul.f32 %v745, %v846
        %v875 = vmul.f32 %v747, %v850
        %v876 = vmul.f32 %v749, %v854
        %v877 = vmul.f32 %v751, %v858
        %v878 = vmul.f32 %v753, %v862
        %887 = vset.pattern.permute.xlu0 0
        %888 = vperm.xlu0 %887, %v871
        %v889 = vpop.permute.xlu0 %888
        %890 = vset.pattern.permute.xlu0 0
        %891 = vperm.xlu0 %890, %v872
        %v892 = vpop.permute.xlu0 %891
        %893 = vset.pattern.permute.xlu0 0
        %894 = vperm.xlu0 %893, %v873
        %v895 = vpop.permute.xlu0 %894
        %896 = vset.pattern.permute.xlu0 0
        %897 = vperm.xlu0 %896, %v874
        %v898 = vpop.permute.xlu0 %897
        %899 = vset.pattern.permute.xlu0 0
        %900 = vperm.xlu0 %899, %v875
        %v901 = vpop.permute.xlu0 %900
        %902 = vset.pattern.permute.xlu0 0
        %903 = vperm.xlu0 %902, %v876
        %v904 = vpop.permute.xlu0 %903
        %905 = vset.pattern.permute.xlu0 0
        %906 = vperm.xlu0 %905, %v877
        %v907 = vpop.permute.xlu0 %906
        %908 = vset.pattern.permute.xlu0 0
        %909 = vperm.xlu0 %908, %v878
        %v910 = vpop.permute.xlu0 %909
        %v911 = vlaneseq
        %v912 = vshrl.u32 %v911, 7
        %v913 = vsub.s32 %v637, %v912
        %v914 = vrot.slane %v889, %v913
        %v915 = vlaneseq
        %v916 = vshrl.u32 %v915, 7
        %v917 = vsub.s32 %v637, %v916
        %v918 = vrot.slane %v892, %v917
        %v919 = vlaneseq
        %v920 = vshrl.u32 %v919, 7
        %v921 = vsub.s32 %v637, %v920
        %v922 = vrot.slane %v895, %v921
        %v923 = vlaneseq
        %v924 = vshrl.u32 %v923, 7
        %v925 = vsub.s32 %v637, %v924
        %v926 = vrot.slane %v898, %v925
        %v927 = vlaneseq
        %v928 = vshrl.u32 %v927, 7
        %v929 = vsub.s32 %v637, %v928
        %v930 = vrot.slane %v901, %v929
        %v931 = vlaneseq
        %v932 = vshrl.u32 %v931, 7
        %v933 = vsub.s32 %v637, %v932
        %v934 = vrot.slane %v904, %v933
        %v935 = vlaneseq
        %v936 = vshrl.u32 %v935, 7
        %v937 = vsub.s32 %v637, %v936
        %v938 = vrot.slane %v907, %v937
        %v939 = vlaneseq
        %v940 = vshrl.u32 %v939, 7
        %v941 = vsub.s32 %v637, %v940
        %v942 = vrot.slane %v910, %v941
        %v943 = vsel %vm670, %v918, %v914
        %v944 = vsel %vm672, %v922, %v943
        %v945 = vsel %vm674, %v926, %v944
        %v946 = vsel %vm676, %v930, %v945
        %v947 = vsel %vm678, %v934, %v946
        %v948 = vsel %vm680, %v938, %v947
        %v949 = vsel %vm682, %v942, %v948
        %951 = vst.msk [vmem:[%s255] sm:$0xff] %vm685, %v949
        %s952 = sand.u32 %s120, 1
        %s953 = scalar_lea.sflag [#allocation4], %s952
        %s954 = sand.u32 %s120, 1
        %s955 = smul.addr %s954, 8
        %s956 = scalar_lea.vmem [#allocation10], %s955
        // Predicated region
        $region53: #{tpu_custom_call.1} parent=35 // pred_check
          %p957 = pneg %p130
        $region54: #{tpu_custom_call.1} parent=35 // pred_check_branch
          %959 = sbr.rel (%p957) target = $region56
        $region55: #{tpu_custom_call.1} parent=35 // pred_region
          %s961 = ssub.s32 128, 128
          %962 = vsyncadd %s953, %s961
          %s963 = smul.addr %s23, 128
          %s964 = scalar_lea.hbm %s4, %s963
          %s966 = sshll.u32 %s956, 4
          %s967 = int_to_ptr.vmem [resolvable:$true] %s966
          %969 = dma.vmem_to_hbm [thread:$0]  %s967, 128, %s964, %s953
        $region56: #{tpu_custom_call.1} parent=35 // pred_fallthru
          _
      $region36: #{tpu_custom_call.1} parent=5 // pred_fallthru
        _
      %p970 = scmp.le.s32.totalorder 2, %s18
      // Predicated region
      $region57: #{tpu_custom_call.1} parent=5 // pred_check
        %p971 = pneg %p970
      $region58: #{tpu_custom_call.1} parent=5 // pred_check_branch
        %973 = sbr.rel (%p971) target = $region60
      $region59: #{tpu_custom_call.1} parent=5 // pred_region
        %s974 = ssub.s32 %s18, 2
        // Predicated region
        $region61: #{tpu_custom_call.1} parent=59 // pred_check
          %p975 = pneg %p136
        $region62: #{tpu_custom_call.1} parent=59 // pred_check_branch
          %977 = sbr.rel (%p975) target = $region64
        $region63: #{tpu_custom_call.1} parent=59 // pred_region
          %s978 = sand.u32 %s121, 1
          %s979 = scalar_lea.sflag [#allocation4], %s978
          %s980 = sand.u32 %s121, 1
          %s981 = smul.addr %s980, 8
          %s982 = scalar_lea.vmem [#allocation10], %s981
          %983 = dma.done %s979, 128
        $region64: #{tpu_custom_call.1} parent=59 // pred_fallthru
          _
      $region60: #{tpu_custom_call.1} parent=5 // pred_fallthru
        _
    $region6: #{tpu_custom_call.1} parent=1 // loop_footer
      %s22 = sadd.s32 1, %s18
    $region7: #{tpu_custom_call.1} parent=1 // loop_footer_branch
      %17 = sbr.rel target = $region3
    $region8: #{tpu_custom_call.1} parent=1 // loop_exit
      _
    %984 = vsyncpa [#allocation3], 1
    %s985 = scalar_lea.sflag [#allocation3], 1
    %986 = vsyncpa %s985, 1
    %987 = vsyncpa [#allocation6], 1
    %988 = vsyncpa [#allocation9], 1
    %989 = vsyncpa [#allocation4], 1
    %s990 = scalar_lea.sflag [#allocation4], 1
    %991 = vsyncpa %s990, 1

</llo_original>
